<compile_context>
chip_gen: v5e
topology: v5e:2x2
jax: 0.10.0
libtpu: 0.0.40
codegen_flags: <defaults>
</compile_context>

<pallas_src>
import functools

import jax
import jax.numpy as jnp
from jax import lax
from jax.experimental import pallas as pl
from jax.experimental.pallas import tpu as pltpu

EPS = 1e-6


def _round_up(x: int, m: int) -> int:
    return (x + m - 1) // m * m


def mlp_res_kernel(x_ref, g_ref, beta_ref, w1_ref, b1_ref, w2_ref, b2_ref, o_ref,
                   *, d_real: int):
    """One (TM, D_pad) row tile: fused LN + fc1 + ReLU + fc2 + residual."""
    x = x_ref[...]                                          # [TM, D_pad] f32
    d_pad = x.shape[-1]

    # --- LayerNorm over the true feature count (biased variance, eps=1e-6) ---
    if d_real == d_pad:
        mean = jnp.mean(x, axis=-1, keepdims=True)
        cent = x - mean
        var = jnp.mean(cent * cent, axis=-1, keepdims=True)
    else:
        inv_d = 1.0 / d_real
        col = lax.broadcasted_iota(jnp.int32, x.shape, 1)
        valid = col < d_real                                # padded cols are zero in x
        mean = jnp.sum(x, axis=-1, keepdims=True) * inv_d
        cent = jnp.where(valid, x - mean, 0.0)
        var = jnp.sum(cent * cent, axis=-1, keepdims=True) * inv_d
    xn = cent * lax.rsqrt(var + EPS)
    # gamma/beta are zero in padded columns -> xn is exactly 0 there.
    xn = xn * g_ref[...] + beta_ref[...]                    # [TM, D_pad] f32

    # --- fc1 + ReLU (dropout1 is identity at inference); bf16 MXU, f32 accum ---
    h = jnp.dot(xn.astype(jnp.bfloat16), w1_ref[...],
                preferred_element_type=jnp.float32) + b1_ref[...]
    h = jnp.maximum(h, 0.0)                                 # [TM, H_pad] f32

    # --- fc2 (dropout2 is identity at inference) + residual in f32 ---
    y = jnp.dot(h.astype(jnp.bfloat16), w2_ref[...],
                preferred_element_type=jnp.float32) + b2_ref[...]
    o_ref[...] = (x + y).astype(o_ref.dtype)                # [TM, D_pad]


def mlp_res_block(x, gamma, beta, w1, b1, w2, b2):
    """x: [B, S, D] float32.  w1 = fc1.weight.T  ([D, H]),  w2 = fc2.weight.T ([H, D]),
    gamma/beta/b1/b2 are [1, D] / [1, D] / [1, H] / [1, D]."""
    B, S, D = x.shape
    H = w1.shape[1]
    N = B * S

    # ---- pad feature dims to 128 (lane-dense) and rows to the tile size ----
    D_pad = _round_up(D, 128)
    H_pad = _round_up(H, 128)
    TM = min(512, _round_up(N, 8))
    N_pad = _round_up(N, TM)

    x2 = x.reshape(N, D).astype(jnp.float32)
    x2 = jnp.pad(x2, ((0, N_pad - N), (0, D_pad - D)))

    pad_d = (0, D_pad - D)
    pad_h = (0, H_pad - H)
    g_p = jnp.pad(gamma.astype(jnp.float32), ((0, 0), pad_d))
    be_p = jnp.pad(beta.astype(jnp.float32), ((0, 0), pad_d))
    w1_p = jnp.pad(w1, (pad_d, pad_h)).astype(jnp.bfloat16)
    b1_p = jnp.pad(b1.astype(jnp.float32), ((0, 0), pad_h))
    w2_p = jnp.pad(w2, (pad_h, pad_d)).astype(jnp.bfloat16)
    b2_p = jnp.pad(b2.astype(jnp.float32), ((0, 0), pad_d))

    grid = (N_pad // TM,)

    # ---- VMEM budget: 2x double-buffered x/out tiles + resident weights + headroom ----
    tile_bytes = TM * D_pad * 4
    weight_bytes = (D_pad * H_pad + H_pad * D_pad) * 2          # bf16 w1 + w2
    small_bytes = (3 * D_pad + H_pad) * 4                       # gamma/beta/biases
    h_bytes = TM * H_pad * 4                                    # fc1 activation
    vmem_limit = int(1.5 * (4 * tile_bytes + weight_bytes + small_bytes + h_bytes))
    vmem_limit = max(16 << 20, min(vmem_limit + (4 << 20), 48 << 20))

    cost = pl.CostEstimate(
        flops=2 * 2 * N_pad * D_pad * H_pad,                    # two GEMMs
        transcendentals=0,
        bytes_accessed=2 * N_pad * D_pad * 4 + weight_bytes + small_bytes,
    )

    out = pl.pallas_call(
        functools.partial(mlp_res_kernel, d_real=D),
        out_shape=jax.ShapeDtypeStruct((N_pad, D_pad), x.dtype),
        grid=grid,
        in_specs=[
            pl.BlockSpec((TM, D_pad), lambda i: (i, 0)),        # x tile (pipelined)
            pl.BlockSpec((1, D_pad), lambda i: (0, 0)),         # LN gamma (resident)
            pl.BlockSpec((1, D_pad), lambda i: (0, 0)),         # LN beta
            pl.BlockSpec((D_pad, H_pad), lambda i: (0, 0)),     # fc1 weight.T (bf16)
            pl.BlockSpec((1, H_pad), lambda i: (0, 0)),         # fc1 bias
            pl.BlockSpec((H_pad, D_pad), lambda i: (0, 0)),     # fc2 weight.T (bf16)
            pl.BlockSpec((1, D_pad), lambda i: (0, 0)),         # fc2 bias
        ],
        out_specs=pl.BlockSpec((TM, D_pad), lambda i: (i, 0)),
        compiler_params=pltpu.CompilerParams(
            dimension_semantics=("parallel",),                  # shard row tiles across TCs (v7x)
            vmem_limit_bytes=vmem_limit,
        ),
        cost_estimate=cost,
    )(x2, g_p, be_p, w1_p, b1_p, w2_p, b2_p)

    return out[:N, :D].reshape(B, S, D)


def reference(x, gamma, beta, w1, b1, w2, b2):
    """Pure-JAX f32 reference matching the PyTorch module (eval mode)."""
    xf = x.astype(jnp.float32)
    mean = jnp.mean(xf, axis=-1, keepdims=True)
    var = jnp.mean((xf - mean) ** 2, axis=-1, keepdims=True)
    xn = (xf - mean) * lax.rsqrt(var + EPS) * gamma[0] + beta[0]
    h = jnp.maximum(xn @ w1 + b1[0], 0.0)
    y = h @ w2 + b2[0]
    return x + y


if __name__ == "__main__":
    # Small shapes consistent with the module: tokens of dim in_dim, hidden hid_dim.
    B, S, IN_DIM, HID_DIM = 2, 8, 32, 64
    key = jax.random.PRNGKey(0)
    kx, k1, k2, k3, k4 = jax.random.split(key, 5)

    x = jax.random.normal(kx, (B, S, IN_DIM), dtype=jnp.float32)

    # Deterministic synthetic parameters (PyTorch-like scales).
    gamma = jnp.ones((1, IN_DIM), dtype=jnp.float32)                         # LayerNorm weight
    beta = jnp.zeros((1, IN_DIM), dtype=jnp.float32)                         # LayerNorm bias
    w1 = jax.random.normal(k1, (IN_DIM, HID_DIM), dtype=jnp.float32) * 0.05  # fc1.weight.T
    b1 = jax.random.normal(k2, (1, HID_DIM), dtype=jnp.float32) * 0.05       # fc1.bias
    w2 = jax.random.normal(k3, (HID_DIM, IN_DIM), dtype=jnp.float32) * 0.05  # fc2.weight.T
    b2 = jax.random.normal(k4, (1, IN_DIM), dtype=jnp.float32) * 0.05        # fc2.bias

    out = mlp_res_block(x, gamma, beta, w1, b1, w2, b2)
    out = jax.block_until_ready(out)

    ref = reference(x, gamma, beta, w1, b1, w2, b2)
    assert out.shape == x.shape
    # bf16 MXU operands (f32 accumulation) -> compare against f32 reference with
    # a tolerance that covers bf16 rounding of the GEMM inputs.
    assert jnp.allclose(out, ref, atol=2e-2, rtol=2e-2), "mismatch vs reference"
    print("KERNEL_OK")
</pallas_src>

<mosaic_0001>
module attributes {stable_mosaic.version = 11 : i64} {
  func.func @mlp_res_kernel(%arg0: i32, %arg1: memref<16x128xf32, #tpu.memory_space<vmem>>, %arg2: memref<1x128xf32, #tpu.memory_space<vmem>>, %arg3: memref<1x128xf32, #tpu.memory_space<vmem>>, %arg4: memref<128x128xbf16, #tpu.memory_space<vmem>>, %arg5: memref<1x128xf32, #tpu.memory_space<vmem>>, %arg6: memref<128x128xbf16, #tpu.memory_space<vmem>>, %arg7: memref<1x128xf32, #tpu.memory_space<vmem>>, %arg8: memref<16x128xf32, #tpu.memory_space<vmem>>) attributes {dimension_semantics = [#tpu.dimension_semantics<parallel>], iteration_bounds = array<i64: 1>, scalar_prefetch = 0 : i64, scratch_operands = 0 : i64, tpu.core_type = #tpu.core_type<tc>, window_params = [{transform_indices = @transform_0, window_bounds = array<i64: 16, 128>}, {pipeline_mode = #tpu.pipeline_mode<synchronous>, transform_indices = @transform_1, window_bounds = array<i64: 1, 128>}, {pipeline_mode = #tpu.pipeline_mode<synchronous>, transform_indices = @transform_2, window_bounds = array<i64: 1, 128>}, {pipeline_mode = #tpu.pipeline_mode<synchronous>, transform_indices = @transform_3, window_bounds = array<i64: 128, 128>}, {pipeline_mode = #tpu.pipeline_mode<synchronous>, transform_indices = @transform_4, window_bounds = array<i64: 1, 128>}, {pipeline_mode = #tpu.pipeline_mode<synchronous>, transform_indices = @transform_5, window_bounds = array<i64: 128, 128>}, {pipeline_mode = #tpu.pipeline_mode<synchronous>, transform_indices = @transform_6, window_bounds = array<i64: 1, 128>}, {transform_indices = @transform_7, window_bounds = array<i64: 16, 128>}]} {
    %c0 = arith.constant 0 : index
    %c0_0 = arith.constant 0 : index
    %0 = vector.load %arg1[%c0, %c0_0] : memref<16x128xf32, #tpu.memory_space<vmem>>, vector<16x128xf32>
    %1 = tpu.iota {dimensions = array<i32: 1>} : vector<16x128xi32>
    %c32_i32 = arith.constant 32 : i32
    %2 = vector.broadcast %c32_i32 : i32 to vector<16x128xi32>
    %3 = arith.cmpi slt, %1, %2 : vector<16x128xi32>
    %cst = arith.constant dense<0.000000e+00> : vector<16xf32>
    %4 = vector.multi_reduction <add>, %0, %cst [1] : vector<16x128xf32> to vector<16xf32>
    %5 = vector.shape_cast %4 : vector<16xf32> to vector<16x1xf32>
    %cst_1 = arith.constant 3.125000e-02 : f32
    %6 = vector.broadcast %cst_1 : f32 to vector<16x1xf32>
    %7 = arith.mulf %5, %6 : vector<16x1xf32>
    %8 = vector.broadcast %7 : vector<16x1xf32> to vector<16x128xf32>
    %9 = arith.subf %0, %8 : vector<16x128xf32>
    %cst_2 = arith.constant 0.000000e+00 : f32
    %10 = vector.broadcast %cst_2 : f32 to vector<16x128xf32>
    %11 = arith.select %3, %9, %10 : vector<16x128xi1>, vector<16x128xf32>
    %12 = arith.mulf %11, %11 : vector<16x128xf32>
    %cst_3 = arith.constant dense<0.000000e+00> : vector<16xf32>
    %13 = vector.multi_reduction <add>, %12, %cst_3 [1] : vector<16x128xf32> to vector<16xf32>
    %14 = vector.shape_cast %13 : vector<16xf32> to vector<16x1xf32>
    %cst_4 = arith.constant 3.125000e-02 : f32
    %15 = vector.broadcast %cst_4 : f32 to vector<16x1xf32>
    %16 = arith.mulf %14, %15 : vector<16x1xf32>
    %cst_5 = arith.constant 9.99999997E-7 : f32
    %17 = vector.broadcast %cst_5 : f32 to vector<16x1xf32>
    %18 = arith.addf %16, %17 : vector<16x1xf32>
    %19 = math.rsqrt %18 : vector<16x1xf32>
    %20 = vector.broadcast %19 : vector<16x1xf32> to vector<16x128xf32>
    %21 = arith.mulf %11, %20 : vector<16x128xf32>
    %c0_6 = arith.constant 0 : index
    %c0_7 = arith.constant 0 : index
    %22 = vector.load %arg2[%c0_6, %c0_7] : memref<1x128xf32, #tpu.memory_space<vmem>>, vector<1x128xf32>
    %23 = vector.broadcast %22 : vector<1x128xf32> to vector<16x128xf32>
    %24 = arith.mulf %21, %23 : vector<16x128xf32>
    %c0_8 = arith.constant 0 : index
    %c0_9 = arith.constant 0 : index
    %25 = vector.load %arg3[%c0_8, %c0_9] : memref<1x128xf32, #tpu.memory_space<vmem>>, vector<1x128xf32>
    %26 = vector.broadcast %25 : vector<1x128xf32> to vector<16x128xf32>
    %27 = arith.addf %24, %26 : vector<16x128xf32>
    %28 = arith.truncf %27 : vector<16x128xf32> to vector<16x128xbf16>
    %c0_10 = arith.constant 0 : index
    %c0_11 = arith.constant 0 : index
    %29 = vector.load %arg4[%c0_10, %c0_11] : memref<128x128xbf16, #tpu.memory_space<vmem>>, vector<128x128xbf16>
    %cst_12 = arith.constant dense<0.000000e+00> : vector<16x128xf32>
    %30 = tpu.matmul %28, %29, %cst_12 {dimension_numbers = #tpu.dot_dimension_numbers<[1], [0], [0], [1], [0, 0, 1, 1], [], []>} : vector<16x128xbf16>, vector<128x128xbf16>, vector<16x128xf32> -> vector<16x128xf32>
    %c0_13 = arith.constant 0 : index
    %c0_14 = arith.constant 0 : index
    %31 = vector.load %arg5[%c0_13, %c0_14] : memref<1x128xf32, #tpu.memory_space<vmem>>, vector<1x128xf32>
    %32 = vector.broadcast %31 : vector<1x128xf32> to vector<16x128xf32>
    %33 = arith.addf %30, %32 : vector<16x128xf32>
    %cst_15 = arith.constant 0.000000e+00 : f32
    %34 = vector.broadcast %cst_15 : f32 to vector<16x128xf32>
    %35 = arith.maximumf %33, %34 : vector<16x128xf32>
    %36 = arith.truncf %35 : vector<16x128xf32> to vector<16x128xbf16>
    %c0_16 = arith.constant 0 : index
    %c0_17 = arith.constant 0 : index
    %37 = vector.load %arg6[%c0_16, %c0_17] : memref<128x128xbf16, #tpu.memory_space<vmem>>, vector<128x128xbf16>
    %cst_18 = arith.constant dense<0.000000e+00> : vector<16x128xf32>
    %38 = tpu.matmul %36, %37, %cst_18 {dimension_numbers = #tpu.dot_dimension_numbers<[1], [0], [0], [1], [0, 0, 1, 1], [], []>} : vector<16x128xbf16>, vector<128x128xbf16>, vector<16x128xf32> -> vector<16x128xf32>
    %c0_19 = arith.constant 0 : index
    %c0_20 = arith.constant 0 : index
    %39 = vector.load %arg7[%c0_19, %c0_20] : memref<1x128xf32, #tpu.memory_space<vmem>>, vector<1x128xf32>
    %40 = vector.broadcast %39 : vector<1x128xf32> to vector<16x128xf32>
    %41 = arith.addf %38, %40 : vector<16x128xf32>
    %42 = arith.addf %0, %41 : vector<16x128xf32>
    %c0_21 = arith.constant 0 : index
    %c0_22 = arith.constant 0 : index
    %43 = vector.load %arg8[%c0_21, %c0_22] : memref<16x128xf32, #tpu.memory_space<vmem>>, vector<16x128xf32>
    tpu.vector_store %arg8[%c0_21, %c0_22], %42 {strides = array<i32>} : memref<16x128xf32, #tpu.memory_space<vmem>>, vector<16x128xf32>,
    return
  }
  func.func @transform_0(%arg0: i32) -> (i32, i32) {
    %c0_i32 = arith.constant 0 : i32
    %c0_i32_0 = arith.constant 0 : i32
    return %arg0, %c0_i32 : i32, i32
  }
  func.func @transform_1(%arg0: i32) -> (i32, i32) {
    %c0_i32 = arith.constant 0 : i32
    %c0_i32_0 = arith.constant 0 : i32
    %c0_i32_1 = arith.constant 0 : i32
    return %c0_i32, %c0_i32_0 : i32, i32
  }
  func.func @transform_2(%arg0: i32) -> (i32, i32) {
    %c0_i32 = arith.constant 0 : i32
    %c0_i32_0 = arith.constant 0 : i32
    %c0_i32_1 = arith.constant 0 : i32
    return %c0_i32, %c0_i32_0 : i32, i32
  }
  func.func @transform_3(%arg0: i32) -> (i32, i32) {
    %c0_i32 = arith.constant 0 : i32
    %c0_i32_0 = arith.constant 0 : i32
    %c0_i32_1 = arith.constant 0 : i32
    return %c0_i32, %c0_i32_0 : i32, i32
  }
  func.func @transform_4(%arg0: i32) -> (i32, i32) {
    %c0_i32 = arith.constant 0 : i32
    %c0_i32_0 = arith.constant 0 : i32
    %c0_i32_1 = arith.constant 0 : i32
    return %c0_i32, %c0_i32_0 : i32, i32
  }
  func.func @transform_5(%arg0: i32) -> (i32, i32) {
    %c0_i32 = arith.constant 0 : i32
    %c0_i32_0 = arith.constant 0 : i32
    %c0_i32_1 = arith.constant 0 : i32
    return %c0_i32, %c0_i32_0 : i32, i32
  }
  func.func @transform_6(%arg0: i32) -> (i32, i32) {
    %c0_i32 = arith.constant 0 : i32
    %c0_i32_0 = arith.constant 0 : i32
    %c0_i32_1 = arith.constant 0 : i32
    return %c0_i32, %c0_i32_0 : i32, i32
  }
  func.func @transform_7(%arg0: i32) -> (i32, i32) {
    %c0_i32 = arith.constant 0 : i32
    %c0_i32_0 = arith.constant 0 : i32
    return %arg0, %c0_i32 : i32, i32
  }
}

</mosaic_0001>

<llo_original>
// kernel: tpu_custom_call.1
$region0: #{tpu_custom_call.1}
  #allocation0 [shape = 'u32[]', space=smem, size = 0x4, offset = 0x4, fixed_abs, tag = 'smem constant byte address 0x4 - core index']
  #allocation1 [shape = 'u32[72,128]{1,0:T(1,128)}', space=vmem, size = 0x9000, scoped, tag = 'internal scratch']
  %s0 = inlined_call_operand.hbm [shape: f32[16,128], index: 0, kind: input, shape index: {}]
  %s1 = inlined_call_operand.hbm [shape: f32[1,128], index: 1, kind: input, shape index: {}]
  %s2 = inlined_call_operand.vmem [shape: f32[1,128], index: 2, kind: input, shape index: {}]
  %s3 = inlined_call_operand.hbm [shape: bf16[128,128], index: 3, kind: input, shape index: {}]
  %s4 = inlined_call_operand.vmem [shape: f32[1,128], index: 4, kind: input, shape index: {}]
  %s5 = inlined_call_operand.hbm [shape: bf16[128,128], index: 5, kind: input, shape index: {}]
  %s6 = inlined_call_operand.vmem [shape: f32[1,128], index: 6, kind: input, shape index: {}]
  %s7 = inlined_call_operand.hbm [shape: f32[16,128], index: 7, kind: output, shape index: {}]
  %s8 = sld [smem:[#allocation0]]
  $region54: #{tpu_custom_call.1} parent=0
    _
  %s10 = ssub.s32 1, %s8
  %s11 = scalar_select 0, %s10, %s8
  $region1: #{tpu_custom_call.1} parent=0
    #allocation2 [shape = 'u8[8192]{0}', space=vmem, size = 0x2000, scoped, tag = 'input window, operand 0, single buffered']
    #allocation3 [shape = 's32[1]{0}', space=sflag, size = 0x4, scoped, tag = 'scoped memory for tpu_custom_call.1']
    #allocation4 [shape = 's32[1]{0}', space=sflag, size = 0x4, scoped, tag = 'scoped memory for tpu_custom_call.1']
    #allocation5 [shape = 'u8[512]{0}', space=vmem, size = 0x400, scoped, tag = 'input window, operand 1, single buffered']
    #allocation6 [shape = 's32[1]{0}', space=sflag, size = 0x4, scoped, tag = 'scoped memory for tpu_custom_call.1']
    #allocation7 [shape = 'u8[32768]{0}', space=vmem, size = 0x8000, scoped, tag = 'input window, operand 3, single buffered']
    #allocation8 [shape = 'u8[32768]{0}', space=vmem, size = 0x8000, scoped, tag = 'input window, operand 5, single buffered']
    #allocation9 [shape = 's32[1]{0}', space=sflag, size = 0x4, scoped, tag = 'scoped memory for tpu_custom_call.1']
    #allocation10 [shape = 'u8[8192]{0}', space=vmem, size = 0x2000, scoped, tag = 'output window, operand 0, single buffered']
    %12 = vsyncpa [#allocation3], 0
    %13 = vsyncpa [#allocation6], 0
    %14 = vsyncpa [#allocation9], 0
    %15 = vsyncpa [#allocation4], 0
    // Predicated region
    $region2: #{tpu_custom_call.1} parent=1 // pred_check
      _
    $region3: #{tpu_custom_call.1} parent=1 // pred_check_branch
      %17 = sbr.rel (0) target = $region5
    $region4: #{tpu_custom_call.1} parent=1 // pred_region
      %19 = vsyncadd [#allocation3], 0
      %s20 = sshll.u32 %s0, 4
      %s21 = int_to_ptr.hbm [resolvable:$true] %s20
      %s22 = sshll.u32 [#allocation2], 4
      %s23 = int_to_ptr.vmem [resolvable:$true] %s22
      %28 = dma.hbm_to_vmem [thread:$0]  %s21, 256, %s23, [#allocation3], 128, 128, 8
    $region5: #{tpu_custom_call.1} parent=1 // pred_fallthru
      _
    // Predicated region
    $region6: #{tpu_custom_call.1} parent=1 // pred_check
      _
    $region7: #{tpu_custom_call.1} parent=1 // pred_check_branch
      %30 = sbr.rel (0) target = $region9
    $region8: #{tpu_custom_call.1} parent=1 // pred_region
      %32 = vsyncadd [#allocation6], 0
      %s34 = sshll.u32 %s1, 4
      %s35 = int_to_ptr.hbm [resolvable:$true] %s34
      %s36 = sshll.u32 [#allocation5], 4
      %s37 = int_to_ptr.vmem [resolvable:$true] %s36
      %39 = dma.hbm_to_vmem [thread:$0]  %s35, 16, %s37, [#allocation6]
    $region9: #{tpu_custom_call.1} parent=1 // pred_fallthru
      _
    // Predicated region
    $region10: #{tpu_custom_call.1} parent=1 // pred_check
      _
    $region11: #{tpu_custom_call.1} parent=1 // pred_check_branch
      %41 = sbr.rel (0) target = $region13
    $region12: #{tpu_custom_call.1} parent=1 // pred_region
      _
    $region13: #{tpu_custom_call.1} parent=1 // pred_fallthru
      _
    // Predicated region
    $region14: #{tpu_custom_call.1} parent=1 // pred_check
      _
    $region15: #{tpu_custom_call.1} parent=1 // pred_check_branch
      %43 = sbr.rel (0) target = $region17
    $region16: #{tpu_custom_call.1} parent=1 // pred_region
      %45 = vsyncadd [#allocation6], 0
      %s46 = sshll.u32 %s3, 4
      %s47 = int_to_ptr.hbm [resolvable:$true] %s46
      %s48 = sshll.u32 [#allocation7], 4
      %s49 = int_to_ptr.vmem [resolvable:$true] %s48
      %54 = dma.hbm_to_vmem [thread:$0]  %s47, 1024, %s49, [#allocation6], 64, 64, 4
    $region17: #{tpu_custom_call.1} parent=1 // pred_fallthru
      _
    // Predicated region
    $region18: #{tpu_custom_call.1} parent=1 // pred_check
      _
    $region19: #{tpu_custom_call.1} parent=1 // pred_check_branch
      %56 = sbr.rel (0) target = $region21
    $region20: #{tpu_custom_call.1} parent=1 // pred_region
      _
    $region21: #{tpu_custom_call.1} parent=1 // pred_fallthru
      _
    // Predicated region
    $region22: #{tpu_custom_call.1} parent=1 // pred_check
      _
    $region23: #{tpu_custom_call.1} parent=1 // pred_check_branch
      %58 = sbr.rel (0) target = $region25
    $region24: #{tpu_custom_call.1} parent=1 // pred_region
      %60 = vsyncadd [#allocation9], 0
      %s61 = sshll.u32 %s5, 4
      %s62 = int_to_ptr.hbm [resolvable:$true] %s61
      %s63 = sshll.u32 [#allocation8], 4
      %s64 = int_to_ptr.vmem [resolvable:$true] %s63
      %69 = dma.hbm_to_vmem [thread:$0]  %s62, 1024, %s64, [#allocation9], 64, 64, 4
    $region25: #{tpu_custom_call.1} parent=1 // pred_fallthru
      _
    // Predicated region
    $region26: #{tpu_custom_call.1} parent=1 // pred_check
      _
    $region27: #{tpu_custom_call.1} parent=1 // pred_check_branch
      %71 = sbr.rel (0) target = $region29
    $region28: #{tpu_custom_call.1} parent=1 // pred_region
      _
    $region29: #{tpu_custom_call.1} parent=1 // pred_fallthru
      _
    // Predicated region
    $region30: #{tpu_custom_call.1} parent=1 // pred_check
      _
    $region31: #{tpu_custom_call.1} parent=1 // pred_check_branch
      %73 = sbr.rel (0) target = $region33
    $region32: #{tpu_custom_call.1} parent=1 // pred_region
      %75 = dma.done [#allocation3], 256
    $region33: #{tpu_custom_call.1} parent=1 // pred_fallthru
      _
    // Predicated region
    $region34: #{tpu_custom_call.1} parent=1 // pred_check
      _
    $region35: #{tpu_custom_call.1} parent=1 // pred_check_branch
      %77 = sbr.rel (0) target = $region37
    $region36: #{tpu_custom_call.1} parent=1 // pred_region
      %79 = dma.done [#allocation6], 16
    $region37: #{tpu_custom_call.1} parent=1 // pred_fallthru
      _
    // Predicated region
    $region38: #{tpu_custom_call.1} parent=1 // pred_check
      _
    $region39: #{tpu_custom_call.1} parent=1 // pred_check_branch
      %81 = sbr.rel (0) target = $region41
    $region40: #{tpu_custom_call.1} parent=1 // pred_region
      %83 = dma.done [#allocation6], 1024
    $region41: #{tpu_custom_call.1} parent=1 // pred_fallthru
      _
    // Predicated region
    $region42: #{tpu_custom_call.1} parent=1 // pred_check
      _
    $region43: #{tpu_custom_call.1} parent=1 // pred_check_branch
      %85 = sbr.rel (0) target = $region45
    $region44: #{tpu_custom_call.1} parent=1 // pred_region
      %87 = dma.done [#allocation9], 1024
    $region45: #{tpu_custom_call.1} parent=1 // pred_fallthru
      _
    %v88 = vld [vmem:[#allocation2] sm:$0xff]
    %v89 = vld [vmem:[#allocation2 + $0x8] sm:$0xff]
    %v90 = vlaneseq
    %v91 = vand.u32 %v90, 127
    %vm92 = vcmp.lt.s32.totalorder %v91, 32
    %93 = vadd.xlane.f32.xlu0 %v88
    %v94 = vpop.xlane.xlu0 %93
    %95 = vadd.xlane.f32.xlu0 %v89
    %v96 = vpop.xlane.xlu0 %95
    %v97 = vmul.f32 %v94, 0.03125
    %v98 = vmul.f32 %v96, 0.03125
    %v99 = vsub.f32 %v88, %v97
    %v100 = vsub.f32 %v89, %v98
    %v101 = vsel %vm92, %v99, 0.0
    %v102 = vsel %vm92, %v100, 0.0
    %v103 = vmul.f32 %v101, %v101
    %v104 = vmul.f32 %v102, %v102
    %105 = vadd.xlane.f32.xlu0 %v103
    %v106 = vpop.xlane.xlu0 %105
    %107 = vadd.xlane.f32.xlu0 %v104
    %v108 = vpop.xlane.xlu0 %107
    %v109 = vmul.f32 %v106, 0.03125
    %v110 = vmul.f32 %v108, 0.03125
    %v111 = vadd.f32 %v109, 1e-06
    %v112 = vadd.f32 %v110, 1e-06
    %v113 = vrsqrt.pop %v111
    %v114 = vmul.f32 %v113, %v111
    %v115 = vmul.f32 %v114, %v113
    %v116 = vmul.f32 0.5, %v115
    %v117 = vsub.f32 1.5, %v116
    %v118 = vmul.f32 %v113, %v117
    %vm119 = vweird.f32 %v111
    %vm120 = vweird.f32 %v113
    %vm121 = vmor %vm119, %vm120
    %v122 = vsel %vm121, %v113, %v118
    %v123 = vrsqrt.pop %v112
    %v124 = vmul.f32 %v123, %v112
    %v125 = vmul.f32 %v124, %v123
    %v126 = vmul.f32 0.5, %v125
    %v127 = vsub.f32 1.5, %v126
    %v128 = vmul.f32 %v123, %v127
    %vm129 = vweird.f32 %v112
    %vm130 = vweird.f32 %v123
    %vm131 = vmor %vm129, %vm130
    %v132 = vsel %vm131, %v123, %v128
    %v133 = vmul.f32 %v101, %v122
    %v134 = vmul.f32 %v102, %v132
    %v135 = vld [vmem:[#allocation5] sm:$0x1]
    %v137 = vperm.slane %v135, 0
    %v139 = vmul.f32 %v133, %v137
    %v140 = vmul.f32 %v134, %v137
    %v141 = vld [vmem:[%s2] sm:$0x1]
    %v143 = vperm.slane %v141, 0
    %v145 = vadd.f32 %v139, %v143
    %v146 = vadd.f32 %v140, %v143
    %v147 = vpack.c.bf16 %v146, %v145
    %v148 = vld [vmem:[#allocation7] sm:$0xf]
    %v149 = vld [vmem:[#allocation7 + $0x4] sm:$0xf]
    %v150 = vld [vmem:[#allocation7 + $0x8] sm:$0xf]
    %v151 = vld [vmem:[#allocation7 + $0xc] sm:$0xf]
    %v152 = vld [vmem:[#allocation7 + $0x10] sm:$0xf]
    %v153 = vld [vmem:[#allocation7 + $0x14] sm:$0xf]
    %v154 = vld [vmem:[#allocation7 + $0x18] sm:$0xf]
    %v155 = vld [vmem:[#allocation7 + $0x1c] sm:$0xf]
    %v156 = vld [vmem:[#allocation7 + $0x20] sm:$0xf]
    %v157 = vld [vmem:[#allocation7 + $0x24] sm:$0xf]
    %v158 = vld [vmem:[#allocation7 + $0x28] sm:$0xf]
    %v159 = vld [vmem:[#allocation7 + $0x2c] sm:$0xf]
    %v160 = vld [vmem:[#allocation7 + $0x30] sm:$0xf]
    %v161 = vld [vmem:[#allocation7 + $0x34] sm:$0xf]
    %v162 = vld [vmem:[#allocation7 + $0x38] sm:$0xf]
    %v163 = vld [vmem:[#allocation7 + $0x3c] sm:$0xf]
    %v164 = vld [vmem:[%s4] sm:$0x1]
    %v166 = vperm.slane %v164, 0
    %v184 = vunpack.c.l.b16 %v148
    %v185 = vunpack.c.l.b16 %v149
    %v186 = vunpack.c.l.b16 %v150
    %v187 = vunpack.c.l.b16 %v151
    %v188 = vunpack.c.l.b16 %v152
    %v189 = vunpack.c.l.b16 %v153
    %v190 = vunpack.c.l.b16 %v154
    %v191 = vunpack.c.l.b16 %v155
    %v192 = vunpack.c.l.b16 %v156
    %v193 = vunpack.c.l.b16 %v157
    %v194 = vunpack.c.l.b16 %v158
    %v195 = vunpack.c.l.b16 %v159
    %v196 = vunpack.c.l.b16 %v160
    %v197 = vunpack.c.l.b16 %v161
    %v198 = vunpack.c.l.b16 %v162
    %v199 = vunpack.c.l.b16 %v163
    %v200 = vpack.c.b16 %v185, %v184
    %v201 = vpack.c.b16 %v187, %v186
    %v202 = vpack.c.b16 %v189, %v188
    %v203 = vpack.c.b16 %v191, %v190
    %v204 = vpack.c.b16 %v193, %v192
    %v205 = vpack.c.b16 %v195, %v194
    %v206 = vpack.c.b16 %v197, %v196
    %v207 = vpack.c.b16 %v199, %v198
    %216 = vmatpush.bf16.msra.mxu0 %v207
    %217 = vmatpush.bf16.msra.mxu0 %v206
    %218 = vmatpush.bf16.msra.mxu0 %v205
    %219 = vmatpush.bf16.msra.mxu0 %v204
    %220 = vmatpush.bf16.msra.mxu0 %v203
    %221 = vmatpush.bf16.msra.mxu0 %v202
    %222 = vmatpush.bf16.msra.mxu0 %v201
    %223 = vmatpush.bf16.msra.mxu0 %v200
    %224 = vmatmul.bf16.gmra.mxu0 %v147
    %v225 = vpop.f32.mrf.mxu0
    %v226 = vadd.f32 %v166, %v225
    %v227 = vpop.f32.mrf.mxu0
    %v228 = vadd.f32 %v166, %v227
    %229 = vdwg.mxu0
    %v230 = vmax.f32 %v226, 0.0
    %v231 = vmax.f32 %v228, 0.0
    %v232 = vpack.c.bf16 %v231, %v230
    %v233 = vld [vmem:[#allocation8] sm:$0xf]
    %v234 = vld [vmem:[#allocation8 + $0x4] sm:$0xf]
    %v235 = vld [vmem:[#allocation8 + $0x8] sm:$0xf]
    %v236 = vld [vmem:[#allocation8 + $0xc] sm:$0xf]
    %v237 = vld [vmem:[#allocation8 + $0x10] sm:$0xf]
    %v238 = vld [vmem:[#allocation8 + $0x14] sm:$0xf]
    %v239 = vld [vmem:[#allocation8 + $0x18] sm:$0xf]
    %v240 = vld [vmem:[#allocation8 + $0x1c] sm:$0xf]
    %v241 = vld [vmem:[#allocation8 + $0x20] sm:$0xf]
    %v242 = vld [vmem:[#allocation8 + $0x24] sm:$0xf]
    %v243 = vld [vmem:[#allocation8 + $0x28] sm:$0xf]
    %v244 = vld [vmem:[#allocation8 + $0x2c] sm:$0xf]
    %v245 = vld [vmem:[#allocation8 + $0x30] sm:$0xf]
    %v246 = vld [vmem:[#allocation8 + $0x34] sm:$0xf]
    %v247 = vld [vmem:[#allocation8 + $0x38] sm:$0xf]
    %v248 = vld [vmem:[#allocation8 + $0x3c] sm:$0xf]
    %v249 = vld [vmem:[%s6] sm:$0x1]
    %v251 = vperm.slane %v249, 0
    %v269 = vunpack.c.l.b16 %v233
    %v270 = vunpack.c.l.b16 %v234
    %v271 = vunpack.c.l.b16 %v235
    %v272 = vunpack.c.l.b16 %v236
    %v273 = vunpack.c.l.b16 %v237
    %v274 = vunpack.c.l.b16 %v238
    %v275 = vunpack.c.l.b16 %v239
    %v276 = vunpack.c.l.b16 %v240
    %v277 = vunpack.c.l.b16 %v241
    %v278 = vunpack.c.l.b16 %v242
    %v279 = vunpack.c.l.b16 %v243
    %v280 = vunpack.c.l.b16 %v244
    %v281 = vunpack.c.l.b16 %v245
    %v282 = vunpack.c.l.b16 %v246
    %v283 = vunpack.c.l.b16 %v247
    %v284 = vunpack.c.l.b16 %v248
    %v285 = vpack.c.b16 %v270, %v269
    %v286 = vpack.c.b16 %v272, %v271
    %v287 = vpack.c.b16 %v274, %v273
    %v288 = vpack.c.b16 %v276, %v275
    %v289 = vpack.c.b16 %v278, %v277
    %v290 = vpack.c.b16 %v280, %v279
    %v291 = vpack.c.b16 %v282, %v281
    %v292 = vpack.c.b16 %v284, %v283
    %301 = vmatpush.bf16.msra.mxu0 %v292
    %302 = vmatpush.bf16.msra.mxu0 %v291
    %303 = vmatpush.bf16.msra.mxu0 %v290
    %304 = vmatpush.bf16.msra.mxu0 %v289
    %305 = vmatpush.bf16.msra.mxu0 %v288
    %306 = vmatpush.bf16.msra.mxu0 %v287
    %307 = vmatpush.bf16.msra.mxu0 %v286
    %308 = vmatpush.bf16.msra.mxu0 %v285
    %309 = vmatmul.bf16.gmra.mxu0 %v232
    %v310 = vpop.f32.mrf.mxu0
    %v311 = vadd.f32 %v251, %v310
    %v312 = vpop.f32.mrf.mxu0
    %v313 = vadd.f32 %v251, %v312
    %314 = vdwg.mxu0
    %v315 = vadd.f32 %v88, %v311
    %v316 = vadd.f32 %v89, %v313
    %317 = vst [vmem:[#allocation10] sm:$0xff] %v315
    %318 = vst [vmem:[#allocation10 + $0x8] sm:$0xff] %v316
    // Predicated region
    $region46: #{tpu_custom_call.1} parent=1 // pred_check
      _
    $region47: #{tpu_custom_call.1} parent=1 // pred_check_branch
      %320 = sbr.rel (0) target = $region49
    $region48: #{tpu_custom_call.1} parent=1 // pred_region
      %322 = vsyncadd [#allocation4], 0
      %s323 = sshll.u32 [#allocation10], 4
      %s324 = int_to_ptr.vmem [resolvable:$true] %s323
      %s325 = sshll.u32 %s7, 4
      %s326 = int_to_ptr.hbm [resolvable:$true] %s325
      %331 = dma.vmem_to_hbm [thread:$0]  %s324, 256, %s326, [#allocation4], 128, 128, 8
    $region49: #{tpu_custom_call.1} parent=1 // pred_fallthru
      _
    // Predicated region
    $region50: #{tpu_custom_call.1} parent=1 // pred_check
      _
    $region51: #{tpu_custom_call.1} parent=1 // pred_check_branch
      %333 = sbr.rel (0) target = $region53
    $region52: #{tpu_custom_call.1} parent=1 // pred_region
      %335 = dma.done [#allocation4], 256
    $region53: #{tpu_custom_call.1} parent=1 // pred_fallthru
      _
    %336 = vsyncpa [#allocation3], 1
    %337 = vsyncpa [#allocation6], 1
    %338 = vsyncpa [#allocation9], 1
    %339 = vsyncpa [#allocation4], 1

</llo_original>
